<compile_context>
chip_gen: v7x
topology: tpu7x:2x2x1
jax: 0.10.0
libtpu: 0.0.40
codegen_flags: <defaults>
</compile_context>

<pallas_src>
import functools

import jax
import jax.numpy as jnp
from jax import lax
from jax.experimental import pallas as pl
from jax.experimental.pallas import tpu as pltpu


def _round_up(x: int, m: int) -> int:
    return ((x + m - 1) // m) * m


def _tree_fold(op, xs):
    xs = list(xs)
    while len(xs) > 1:
        nxt = [op(xs[i], xs[i + 1]) for i in range(0, len(xs) - 1, 2)]
        if len(xs) % 2:
            nxt.append(xs[-1])
        xs = nxt
    return xs[0]


def _emit_fold(x_ref, max_acc, sum_acc, *, tl, valid, group):
    """Fold the (TM, tl) tile into the (TM, cw) fp32 accumulators.

    `valid` (static) = number of in-range lanes of this tile; lanes >= valid are
    DMA padding and are skipped (chunk fully out of range) or masked with static
    neutral elements (only the single straddling chunk). `group` consecutive
    full-width chunks are tree-folded in vregs before one accumulator
    read-modify-write.
    """
    cw = max_acc.shape[1]  # chunk width (<= 128)

    def load_chunk(j, w):
        c = x_ref[:, j:j + w].astype(jnp.float32)       # per-chunk upcast
        nvalid = min(w, valid - j)                      # static, >= 1
        if nvalid < w:
            lane = lax.broadcasted_iota(jnp.int32, (1, w), 1)
            mask = lane < nvalid                        # static (1, w) mask
            return jnp.where(mask, c, -jnp.inf), jnp.where(mask, c, 0.0)
        return c, c

    # Full-width chunks with at least one valid lane, group-folded in vregs.
    full = [j for j in range(0, tl - cw + 1, cw) if j < valid]
    for g0 in range(0, len(full), group):
        chunks = [load_chunk(j, cw) for j in full[g0:g0 + group]]
        gmax = _tree_fold(jnp.maximum, [c[0] for c in chunks])
        gsum = _tree_fold(jnp.add, [c[1] for c in chunks])
        max_acc[...] = jnp.maximum(max_acc[...], gmax)
        sum_acc[...] = sum_acc[...] + gsum

    # Ragged final chunk (width < cw), if present and in range.
    j = (tl // cw) * cw
    if j < tl and j < valid:
        w = tl - j
        cmax, csum = load_chunk(j, w)
        max_acc[:, :w] = jnp.maximum(max_acc[:, :w], cmax)
        sum_acc[:, :w] = sum_acc[:, :w] + csum


def _concat_pool_kernel(x_ref, o_ref, max_acc, sum_acc, *, tl, rem, group, inv_l):
    """x_ref: (TM, TL) tile; o_ref: (TM, 2); scratch: (TM, <=128) fp32 accumulators."""
    k = pl.program_id(1)
    nk = pl.num_programs(1)

    @pl.when(k == 0)
    def _init():
        # Running max must start at -inf (not 0); sum starts at 0.
        max_acc[...] = jnp.full(max_acc.shape, -jnp.inf, dtype=jnp.float32)
        sum_acc[...] = jnp.zeros(sum_acc.shape, dtype=jnp.float32)

    if rem == 0:
        # L divides evenly into TL blocks: unmasked fold on every step.
        _emit_fold(x_ref, max_acc, sum_acc, tl=tl, valid=tl, group=group)
    else:
        # Steady state (all but last L block): unmasked fold.
        @pl.when(k < nk - 1)
        def _steady():
            _emit_fold(x_ref, max_acc, sum_acc, tl=tl, valid=tl, group=group)

        # Last L block: only the statically-known trailing lanes are masked.
        @pl.when(k == nk - 1)
        def _last():
            _emit_fold(x_ref, max_acc, sum_acc, tl=tl, valid=rem, group=group)

    @pl.when(k == nk - 1)
    def _finalize():
        mx = jnp.max(max_acc[...], axis=-1, keepdims=True)            # (TM, 1)
        av = jnp.sum(sum_acc[...], axis=-1, keepdims=True) * inv_l    # (TM, 1)
        # Single combined 2-lane store instead of two 1-lane masked stores.
        o_ref[...] = jnp.concatenate([mx, av], axis=-1).astype(o_ref.dtype)


def adaptive_concat_pool1d(x: jax.Array) -> jax.Array:
    """x: (N, C, L) -> (N, 2*C, 1), matching AdaptiveConcatPool1d(sz=None)."""
    n, c, l = x.shape
    nc = n * c
    x2 = x.reshape(nc, l)  # free view: NCL is row-major

    # Lane (reduction) tile: ~16 KiB of lanes per row per step (dtype-aware:
    # 4096 for f32, 8192 for bf16) -> ~8 MiB input block at TM=512, ~16 MiB
    # double-buffered. Multiple of 128 when tiled, full dim otherwise.
    itemsize = x.dtype.itemsize
    tl_max = max(128, (16 * 1024) // itemsize)
    tl = tl_max if l > tl_max else l
    rem = l % tl  # 0 unless the last L block is ragged

    # Row (sublane) tile: multiple of 16 (bf16 packing) and >= 2 row blocks
    # whenever nc >= 16 so v7x's two TensorCores both get work on the
    # "parallel" axis; full dim when nc is tiny.
    if nc < 16:
        tm = nc
    else:
        tm = min(512, _round_up(pl.cdiv(nc, 2), 16))

    acc_w = min(128, tl)
    grid = (pl.cdiv(nc, tm), pl.cdiv(l, tl))

    kernel = functools.partial(
        _concat_pool_kernel, tl=tl, rem=rem, group=4, inv_l=1.0 / l)

    out2 = pl.pallas_call(
        kernel,
        # Tiny fp32 kernel output; cast to input dtype in the wrapper.
        out_shape=jax.ShapeDtypeStruct((nc, 2), jnp.float32),
        grid=grid,
        in_specs=[pl.BlockSpec((tm, tl), lambda i, k: (i, k))],
        out_specs=pl.BlockSpec((tm, 2), lambda i, k: (i, 0)),
        scratch_shapes=[pltpu.VMEM((tm, acc_w), jnp.float32),   # running max
                        pltpu.VMEM((tm, acc_w), jnp.float32)],  # running sum
        compiler_params=pltpu.CompilerParams(
            dimension_semantics=("parallel", "arbitrary"),
            # ~16.5 MiB actual footprint; 48 MiB covers it on v5e's 16 MiB
            # scoped default while staying under v7x's 64 MiB physical VMEM.
            vmem_limit_bytes=48 * 1024 * 1024),
    )(x2)

    mx = out2[:, 0].reshape(n, c, 1)
    av = out2[:, 1].reshape(n, c, 1)
    return jnp.concatenate([mx, av], axis=1).astype(x.dtype)


def _reference(x: jax.Array) -> jax.Array:
    x32 = x.astype(jnp.float32)
    mx = jnp.max(x32, axis=-1, keepdims=True)
    av = jnp.mean(x32, axis=-1, keepdims=True)
    return jnp.concatenate([mx, av], axis=1).astype(x.dtype)


if __name__ == "__main__":
    key = jax.random.PRNGKey(0)
    k1, k2, k3, k4 = jax.random.split(key, 4)

    # Small canonical NCL shape: batch=2, channels=4, length=16.
    x1 = jax.random.normal(k1, (2, 4, 16), dtype=jnp.float32)
    o1 = jax.block_until_ready(adaptive_concat_pool1d(x1))
    assert o1.shape == (2, 8, 1), o1.shape
    assert jnp.allclose(o1, _reference(x1), atol=1e-5, rtol=1e-5), "mismatch (small f32)"

    # Longer length: exercises multi-step L pipeline + ragged last L block.
    x2 = jax.random.normal(k2, (2, 4, 4500), dtype=jnp.float32)
    o2 = jax.block_until_ready(adaptive_concat_pool1d(x2))
    assert o2.shape == (2, 8, 1), o2.shape
    assert jnp.allclose(o2, _reference(x2), atol=1e-4, rtol=1e-4), "mismatch (long f32)"

    # bf16 input: per-chunk upcast, fp32 accumulation, cast back at the end.
    x3 = jax.random.normal(k3, (3, 5, 1000), dtype=jnp.bfloat16)
    o3 = jax.block_until_ready(adaptive_concat_pool1d(x3))
    assert o3.shape == (3, 10, 1), o3.shape
    assert jnp.allclose(o3.astype(jnp.float32), _reference(x3).astype(jnp.float32),
                        atol=2e-2, rtol=2e-2), "mismatch (bf16)"

    # nc >= 16: exercises the >=2 row-block split and ragged padding rows.
    x4 = jax.random.normal(k4, (4, 10, 300), dtype=jnp.float32)
    o4 = jax.block_until_ready(adaptive_concat_pool1d(x4))
    assert o4.shape == (4, 20, 1), o4.shape
    assert jnp.allclose(o4, _reference(x4), atol=1e-4, rtol=1e-4), "mismatch (multi-row f32)"

    print("KERNEL_OK")
</pallas_src>

<mosaic_0001>
module attributes {stable_mosaic.version = 11 : i64} {
  func.func @_concat_pool_kernel(%arg0: i32, %arg1: i32, %arg2: memref<8x16xf32, #tpu.memory_space<vmem>>, %arg3: memref<8x2xf32, #tpu.memory_space<vmem>>, %arg4: memref<8x16xf32, #tpu.memory_space<vmem>>, %arg5: memref<8x16xf32, #tpu.memory_space<vmem>>) attributes {dimension_semantics = [#tpu.dimension_semantics<parallel>, #tpu.dimension_semantics<arbitrary>], iteration_bounds = array<i64: 1, 1>, scalar_prefetch = 0 : i64, scratch_operands = 2 : i64, tpu.core_type = #tpu.core_type<tc>, window_params = [{transform_indices = @transform_0, window_bounds = array<i64: 8, 16>}, {transform_indices = @transform_1, window_bounds = array<i64: 8, 2>}]} {
    %c0_i32 = arith.constant 0 : i32
    %0 = arith.cmpi eq, %arg1, %c0_i32 : i32
    %1 = arith.extui %0 : i1 to i32
    %c0_i32_0 = arith.constant 0 : i32
    %2 = arith.cmpi ne, %1, %c0_i32_0 : i32
    scf.if %2 {
      %cst = arith.constant 0xFF800000 : f32
      %13 = vector.broadcast %cst : f32 to vector<8x16xf32>
      %c0_12 = arith.constant 0 : index
      %c0_13 = arith.constant 0 : index
      %14 = vector.load %arg4[%c0_12, %c0_13] : memref<8x16xf32, #tpu.memory_space<vmem>>, vector<8x16xf32>
      tpu.vector_store %arg4[%c0_12, %c0_13], %13 {strides = array<i32>} : memref<8x16xf32, #tpu.memory_space<vmem>>, vector<8x16xf32>,
      %cst_14 = arith.constant 0.000000e+00 : f32
      %15 = vector.broadcast %cst_14 : f32 to vector<8x16xf32>
      %c0_15 = arith.constant 0 : index
      %c0_16 = arith.constant 0 : index
      %16 = vector.load %arg5[%c0_15, %c0_16] : memref<8x16xf32, #tpu.memory_space<vmem>>, vector<8x16xf32>
      tpu.vector_store %arg5[%c0_15, %c0_16], %15 {strides = array<i32>} : memref<8x16xf32, #tpu.memory_space<vmem>>, vector<8x16xf32>,
    } else {
    }
    %c0 = arith.constant 0 : index
    %c0_1 = arith.constant 0 : index
    %3 = vector.load %arg2[%c0, %c0_1] : memref<8x16xf32, #tpu.memory_space<vmem>>, vector<8x16xf32>
    %c0_2 = arith.constant 0 : index
    %c0_3 = arith.constant 0 : index
    %4 = vector.load %arg4[%c0_2, %c0_3] : memref<8x16xf32, #tpu.memory_space<vmem>>, vector<8x16xf32>
    %5 = arith.maximumf %4, %3 : vector<8x16xf32>
    %c0_4 = arith.constant 0 : index
    %c0_5 = arith.constant 0 : index
    %6 = vector.load %arg4[%c0_4, %c0_5] : memref<8x16xf32, #tpu.memory_space<vmem>>, vector<8x16xf32>
    tpu.vector_store %arg4[%c0_4, %c0_5], %5 {strides = array<i32>} : memref<8x16xf32, #tpu.memory_space<vmem>>, vector<8x16xf32>,
    %c0_6 = arith.constant 0 : index
    %c0_7 = arith.constant 0 : index
    %7 = vector.load %arg5[%c0_6, %c0_7] : memref<8x16xf32, #tpu.memory_space<vmem>>, vector<8x16xf32>
    %8 = arith.addf %7, %3 : vector<8x16xf32>
    %c0_8 = arith.constant 0 : index
    %c0_9 = arith.constant 0 : index
    %9 = vector.load %arg5[%c0_8, %c0_9] : memref<8x16xf32, #tpu.memory_space<vmem>>, vector<8x16xf32>
    tpu.vector_store %arg5[%c0_8, %c0_9], %8 {strides = array<i32>} : memref<8x16xf32, #tpu.memory_space<vmem>>, vector<8x16xf32>,
    %c0_i32_10 = arith.constant 0 : i32
    %10 = arith.cmpi eq, %arg1, %c0_i32_10 : i32
    %11 = arith.extui %10 : i1 to i32
    %c0_i32_11 = arith.constant 0 : i32
    %12 = arith.cmpi ne, %11, %c0_i32_11 : i32
    scf.if %12 {
      %c0_12 = arith.constant 0 : index
      %c0_13 = arith.constant 0 : index
      %13 = vector.load %arg4[%c0_12, %c0_13] : memref<8x16xf32, #tpu.memory_space<vmem>>, vector<8x16xf32>
      %cst = arith.constant dense<0xFF800000> : vector<8xf32>
      %14 = vector.multi_reduction <maximumf>, %13, %cst [1] : vector<8x16xf32> to vector<8xf32>
      %15 = vector.shape_cast %14 : vector<8xf32> to vector<8x1xf32>
      %c0_14 = arith.constant 0 : index
      %c0_15 = arith.constant 0 : index
      %16 = vector.load %arg5[%c0_14, %c0_15] : memref<8x16xf32, #tpu.memory_space<vmem>>, vector<8x16xf32>
      %cst_16 = arith.constant dense<0.000000e+00> : vector<8xf32>
      %17 = vector.multi_reduction <add>, %16, %cst_16 [1] : vector<8x16xf32> to vector<8xf32>
      %18 = vector.shape_cast %17 : vector<8xf32> to vector<8x1xf32>
      %cst_17 = arith.constant 6.250000e-02 : f32
      %19 = vector.broadcast %cst_17 : f32 to vector<8x1xf32>
      %20 = arith.mulf %18, %19 : vector<8x1xf32>
      %21 = tpu.concatenate %15, %20 in 1 : vector<8x1xf32>, vector<8x1xf32> -> vector<8x2xf32>
      %c0_18 = arith.constant 0 : index
      %c0_19 = arith.constant 0 : index
      %22 = vector.load %arg3[%c0_18, %c0_19] : memref<8x2xf32, #tpu.memory_space<vmem>>, vector<8x2xf32>
      tpu.vector_store %arg3[%c0_18, %c0_19], %21 {strides = array<i32>} : memref<8x2xf32, #tpu.memory_space<vmem>>, vector<8x2xf32>,
    } else {
    }
    return
  }
  func.func @transform_0(%arg0: i32, %arg1: i32) -> (i32, i32) {
    %c0_i32 = arith.constant 0 : i32
    return %arg0, %arg1 : i32, i32
  }
  func.func @transform_1(%arg0: i32, %arg1: i32) -> (i32, i32) {
    %c0_i32 = arith.constant 0 : i32
    %c0_i32_0 = arith.constant 0 : i32
    return %arg0, %c0_i32 : i32, i32
  }
}

</mosaic_0001>

<llo_original>
// kernel: tpu_custom_call.1
$region0: #{tpu_custom_call.1}
  #allocation0 [shape = 'u32[]', space=smem, size = 0x4, offset = 0x4, fixed_abs, tag = 'smem constant byte address 0x4 - core index']
  #allocation1 [shape = 'u32[144,128]{1,0:T(1,128)}', space=vmem, size = 0x12000, scoped, tag = 'internal scratch']
  #allocation2 [shape = 'f32[8,16]{1,0:T(8,128)}', space=vmem, size = 0x1000, scoped, tag = 'scratch operand']
  #allocation3 [shape = 'f32[8,16]{1,0:T(8,128)}', space=vmem, size = 0x1000, scoped, tag = 'scratch operand']
  %s0 = inlined_call_operand.hbm [shape: f32[8,16], index: 0, kind: input, shape index: {}]
  %s1 = inlined_call_operand.vmem [shape: f32[8,2], index: 1, kind: output, shape index: {}]
  %s2 = sld [smem:[#allocation0]]
  $region26: #{tpu_custom_call.1} parent=0
    _
  %s4 = ssub.s32 1, %s2
  %s5 = scalar_select 0, %s4, %s2
  $region1: #{tpu_custom_call.1} parent=0
    #allocation4 [shape = 'u8[4096]{0}', space=vmem, size = 0x1000, scoped, tag = 'input window, operand 0, single buffered']
    #allocation5 [shape = 's32[1]{0}', space=sflag, size = 0x4, scoped, tag = 'scoped memory for tpu_custom_call.1']
    %6 = vsyncpa [#allocation5], 0
    // Predicated region
    $region2: #{tpu_custom_call.1} parent=1 // pred_check
      _
    $region3: #{tpu_custom_call.1} parent=1 // pred_check_branch
      %8 = sbr.rel (0) target = $region5
    $region4: #{tpu_custom_call.1} parent=1 // pred_region
      %s10 = ssub.s32 128, 128
      %11 = vsyncadd [#allocation5], %s10
      %s13 = sshll.u32 [#allocation4], 4
      %s14 = int_to_ptr.vmem [resolvable:$true] %s13
      %16 = dma.hbm_to_vmem [thread:$0]  %s0, 128, %s14, [#allocation5]
    $region5: #{tpu_custom_call.1} parent=1 // pred_fallthru
      _
    // Predicated region
    $region6: #{tpu_custom_call.1} parent=1 // pred_check
      _
    $region7: #{tpu_custom_call.1} parent=1 // pred_check_branch
      %18 = sbr.rel (0) target = $region9
    $region8: #{tpu_custom_call.1} parent=1 // pred_region
      %19 = dma.done [#allocation5], 128
    $region9: #{tpu_custom_call.1} parent=1 // pred_fallthru
      _
    %p20 = scmp.eq.s32.totalorder 0, 0
    // Predicated region
    $region10: #{tpu_custom_call.1} parent=1 // pred_check
      %p21 = pneg %p20
    $region11: #{tpu_custom_call.1} parent=1 // pred_check_branch
      %23 = sbr.rel (%p21) target = $region13
    $region12: #{tpu_custom_call.1} parent=1 // pred_region
      %vm24 = vcmask 130048
      %25 = vst.msk [vmem:[#allocation2] sm:$0xff] %vm24, -inf
      %26 = vst.msk [vmem:[#allocation3] sm:$0xff] %vm24, 0.0
    $region13: #{tpu_custom_call.1} parent=1 // pred_fallthru
      _
    %v27 = vld [vmem:[#allocation4] sm:$0xff]
    %v28 = vld [vmem:[#allocation2] sm:$0xff]
    %v29 = vmax.f32 %v28, %v27
    %vm30 = vcmask 130048
    %31 = vst.msk [vmem:[#allocation2] sm:$0xff] %vm30, %v29
    %v32 = vld [vmem:[#allocation3] sm:$0xff]
    %v33 = vadd.f32 %v32, %v27
    %34 = vst.msk [vmem:[#allocation3] sm:$0xff] %vm30, %v33
    // Predicated region
    $region14: #{tpu_custom_call.1} parent=1 // pred_check
      %p35 = pneg %p20
    $region15: #{tpu_custom_call.1} parent=1 // pred_check_branch
      %37 = sbr.rel (%p35) target = $region17
    $region16: #{tpu_custom_call.1} parent=1 // pred_region
      %v38 = vld [vmem:[#allocation2] sm:$0xff]
      %v39 = vsel %vm30, %v38, -inf
      %40 = vmax.xlane.f32.xlu0 %v39
      %v41 = vpop.xlane.xlu0 %40
      %v42 = vld [vmem:[#allocation3] sm:$0xff]
      %v43 = vsel %vm30, %v42, 0.0
      %44 = vadd.xlane.f32.xlu0 %v43
      %v45 = vpop.xlane.xlu0 %44
      %v46 = vmul.f32 %v45, 0.0625
      %vm47 = vcmask 7168
      %v48 = vsel %vm47, %v41, %v46
      %vm49 = vcmask 15360
      %50 = vst.msk [vmem:[%s1] sm:$0xff] %vm49, %v48
    $region17: #{tpu_custom_call.1} parent=1 // pred_fallthru
      _
    // Predicated region
    $region18: #{tpu_custom_call.1} parent=1 // pred_check
      _
    $region19: #{tpu_custom_call.1} parent=1 // pred_check_branch
      %52 = sbr.rel (0) target = $region21
    $region20: #{tpu_custom_call.1} parent=1 // pred_region
      _
    $region21: #{tpu_custom_call.1} parent=1 // pred_fallthru
      _
    // Predicated region
    $region22: #{tpu_custom_call.1} parent=1 // pred_check
      _
    $region23: #{tpu_custom_call.1} parent=1 // pred_check_branch
      %54 = sbr.rel (0) target = $region25
    $region24: #{tpu_custom_call.1} parent=1 // pred_region
      _
    $region25: #{tpu_custom_call.1} parent=1 // pred_fallthru
      _
    %55 = vsyncpa [#allocation5], 1

</llo_original>
